<compile_context>
chip_gen: v7x
topology: tpu7x:2x2x1
jax: 0.10.0
libtpu: 0.0.40
codegen_flags: <defaults>
</compile_context>

<pallas_src>
import functools

import jax
import jax.numpy as jnp
from jax.experimental import pallas as pl
from jax.experimental.pallas import tpu as pltpu

_LANE = 128
_NEG = -1e30  # finite "-inf": exp underflows to 0, no NaN from (-inf) - (-inf)


def _round_up(x, m):
    return ((x + m - 1) // m) * m


def _distill_kernel(x_ref, w_ref, b_ref, logits_ref, kl_ref):
    # One fused [teacher | student] matmul on the MXU: bf16 in, f32 accumulate.
    z = jnp.dot(x_ref[...], w_ref[...], preferred_element_type=jnp.float32)
    z = z + b_ref[...]                       # (TB, 2*Cp); padded classes ~ -1e30
    logits_ref[...] = z.astype(logits_ref.dtype)

    cp = z.shape[-1] // 2                    # clean 128-lane split point
    t = z[:, :cp]
    s = z[:, cp:]

    # Numerically-stable log-softmax (f32), then KL(teacher || student) summed
    # over classes.  Padded classes: p_t == 0 and log_pt - log_ps == 0 -> no
    # contribution.  Batch mean (F.kl_div 'batchmean') is done by the wrapper.
    t_max = jnp.max(t, axis=-1, keepdims=True)
    s_max = jnp.max(s, axis=-1, keepdims=True)
    t_lse = t_max + jnp.log(jnp.sum(jnp.exp(t - t_max), axis=-1, keepdims=True))
    s_lse = s_max + jnp.log(jnp.sum(jnp.exp(s - s_max), axis=-1, keepdims=True))
    log_pt = t - t_lse
    log_ps = s - s_lse
    p_t = jnp.exp(log_pt)
    kl_ref[...] = jnp.sum(p_t * (log_pt - log_ps), axis=-1, keepdims=True)


def teacher_student_forward(x, w_teacher, b_teacher, w_student, b_student,
                            *, block_b=256):
    """Fused teacher/student distillation forward.

    Args:
      x:          (B, H) float32 input activations.
      w_teacher:  (H, C) teacher weight,  b_teacher: (1, C) or (C,) bias.
      w_student:  (H, C) student weight,  b_student: (1, C) or (C,) bias.

    Returns:
      (teacher_logits (B, C), student_logits (B, C), loss scalar)
    """
    B, H = x.shape
    C = w_teacher.shape[-1]

    Cp = _round_up(C, _LANE)                 # lane-dense class dim
    TB = min(block_b, _round_up(B, 8))       # batch tile (sublane multiple)
    Bp = _round_up(B, TB)
    n_tiles = Bp // TB

    # --- Pad & concatenate parameters: [teacher | student] along N. ---------
    def pad_w(w):
        return jnp.pad(w, ((0, 0), (0, Cp - C)))

    def pad_b(b):
        b = jnp.asarray(b, jnp.float32).reshape(1, C)
        return jnp.pad(b, ((0, 0), (0, Cp - C)), constant_values=_NEG)

    w_cat = jnp.concatenate([pad_w(w_teacher), pad_w(w_student)],
                            axis=1).astype(jnp.bfloat16)          # (H, 2*Cp)
    b_cat = jnp.concatenate([pad_b(b_teacher), pad_b(b_student)],
                            axis=1).astype(jnp.float32)           # (1, 2*Cp)
    x_p = jnp.pad(x, ((0, Bp - B), (0, 0))).astype(jnp.bfloat16)  # (Bp, H)

    out_shapes = (
        jax.ShapeDtypeStruct((Bp, 2 * Cp), jnp.float32),  # [teacher|student] logits
        jax.ShapeDtypeStruct((Bp, 1), jnp.float32),       # per-example KL
    )

    cost = pl.CostEstimate(
        flops=2 * Bp * H * 2 * Cp,
        transcendentals=3 * Bp * Cp,  # exps + logs in the two softmaxes
        bytes_accessed=(x_p.size * 2 + w_cat.size * 2 + b_cat.size * 4
                        + Bp * 2 * Cp * 4 + Bp * 4),
    )

    logits_cat, kl = pl.pallas_call(
        _distill_kernel,
        out_shape=out_shapes,
        grid=(n_tiles,),
        in_specs=[
            pl.BlockSpec((TB, H), lambda i: (i, 0)),       # x tile
            pl.BlockSpec((H, 2 * Cp), lambda i: (0, 0)),   # fused weights (resident)
            pl.BlockSpec((1, 2 * Cp), lambda i: (0, 0)),   # fused bias (resident)
        ],
        out_specs=(
            pl.BlockSpec((TB, 2 * Cp), lambda i: (i, 0)),
            pl.BlockSpec((TB, 1), lambda i: (i, 0)),
        ),
        compiler_params=pltpu.CompilerParams(
            dimension_semantics=("parallel",),             # megacore / v7x 2 TCs
            vmem_limit_bytes=64 * 1024 * 1024,
        ),
        cost_estimate=cost,
    )(x_p, w_cat, b_cat)

    t_logits = logits_cat[:B, :C]
    s_logits = logits_cat[:B, Cp:Cp + C]
    loss = jnp.mean(kl[:B, 0])               # batchmean over the *real* batch
    return t_logits, s_logits, loss


def _reference(x, wt, bt, ws, bs):
    # Same bf16-input / f32-accumulate numerics as the kernel's matmul.
    xb = x.astype(jnp.bfloat16).astype(jnp.float32)
    wtb = wt.astype(jnp.bfloat16).astype(jnp.float32)
    wsb = ws.astype(jnp.bfloat16).astype(jnp.float32)
    t = xb @ wtb + bt.reshape(1, -1)
    s = xb @ wsb + bs.reshape(1, -1)
    log_pt = jax.nn.log_softmax(t, axis=-1)
    log_ps = jax.nn.log_softmax(s, axis=-1)
    kl = jnp.sum(jnp.exp(log_pt) * (log_pt - log_ps), axis=-1)
    return t, s, jnp.mean(kl)


if __name__ == "__main__":
    # Small shapes implied by a linear teacher/student over flat features.
    B, H, C = 8, 32, 16

    key = jax.random.PRNGKey(0)
    kx, kwt, kbt, kws, kbs = jax.random.split(key, 5)

    x = jax.random.normal(kx, (B, H), dtype=jnp.float32)
    # Deterministic synthetic parameters (kaiming-ish scale), not a checkpoint.
    w_teacher = jax.random.normal(kwt, (H, C), dtype=jnp.float32) / jnp.sqrt(H)
    b_teacher = 0.01 * jax.random.normal(kbt, (1, C), dtype=jnp.float32)
    w_student = jax.random.normal(kws, (H, C), dtype=jnp.float32) / jnp.sqrt(H)
    b_student = 0.01 * jax.random.normal(kbs, (1, C), dtype=jnp.float32)

    t_logits, s_logits, loss = teacher_student_forward(
        x, w_teacher, b_teacher, w_student, b_student)
    jax.block_until_ready((t_logits, s_logits, loss))

    # Sanity check against a pure-JAX reference with matching bf16 matmul inputs.
    t_ref, s_ref, loss_ref = _reference(x, w_teacher, b_teacher, w_student, b_student)
    assert jnp.allclose(t_logits, t_ref, atol=1e-4, rtol=1e-4), "teacher logits mismatch"
    assert jnp.allclose(s_logits, s_ref, atol=1e-4, rtol=1e-4), "student logits mismatch"
    assert jnp.allclose(loss, loss_ref, atol=1e-4, rtol=1e-4), "loss mismatch"

    # TODO(synk): the original TeacherStudent.forward() is an empty stub (`pass`);
    # the distillation math above is the standard forward implied by the class.
    print("KERNEL_OK")
</pallas_src>

<mosaic_0001>
module attributes {stable_mosaic.version = 11 : i64} {
  func.func @_distill_kernel(%arg0: i32, %arg1: memref<8x32xbf16, #tpu.memory_space<vmem>>, %arg2: memref<32x256xbf16, #tpu.memory_space<vmem>>, %arg3: memref<1x256xf32, #tpu.memory_space<vmem>>, %arg4: memref<8x256xf32, #tpu.memory_space<vmem>>, %arg5: memref<8x1xf32, #tpu.memory_space<vmem>>) attributes {dimension_semantics = [#tpu.dimension_semantics<parallel>], iteration_bounds = array<i64: 1>, scalar_prefetch = 0 : i64, scratch_operands = 0 : i64, tpu.core_type = #tpu.core_type<tc>, window_params = [{transform_indices = @transform_0, window_bounds = array<i64: 8, 32>}, {pipeline_mode = #tpu.pipeline_mode<synchronous>, transform_indices = @transform_1, window_bounds = array<i64: 32, 256>}, {pipeline_mode = #tpu.pipeline_mode<synchronous>, transform_indices = @transform_2, window_bounds = array<i64: 1, 256>}, {transform_indices = @transform_3, window_bounds = array<i64: 8, 256>}, {transform_indices = @transform_4, window_bounds = array<i64: 8, 1>}]} {
    %c0 = arith.constant 0 : index
    %c0_0 = arith.constant 0 : index
    %0 = vector.load %arg1[%c0, %c0_0] : memref<8x32xbf16, #tpu.memory_space<vmem>>, vector<8x32xbf16>
    %c0_1 = arith.constant 0 : index
    %c0_2 = arith.constant 0 : index
    %1 = vector.load %arg2[%c0_1, %c0_2] : memref<32x256xbf16, #tpu.memory_space<vmem>>, vector<32x256xbf16>
    %cst = arith.constant dense<0.000000e+00> : vector<8x256xf32>
    %2 = tpu.matmul %0, %1, %cst {dimension_numbers = #tpu.dot_dimension_numbers<[1], [0], [0], [1], [0, 0, 1, 1], [], []>} : vector<8x32xbf16>, vector<32x256xbf16>, vector<8x256xf32> -> vector<8x256xf32>
    %c0_3 = arith.constant 0 : index
    %c0_4 = arith.constant 0 : index
    %3 = vector.load %arg3[%c0_3, %c0_4] : memref<1x256xf32, #tpu.memory_space<vmem>>, vector<1x256xf32>
    %4 = vector.broadcast %3 : vector<1x256xf32> to vector<8x256xf32>
    %5 = arith.addf %2, %4 : vector<8x256xf32>
    %c0_5 = arith.constant 0 : index
    %c0_6 = arith.constant 0 : index
    %6 = vector.load %arg4[%c0_5, %c0_6] : memref<8x256xf32, #tpu.memory_space<vmem>>, vector<8x256xf32>
    tpu.vector_store %arg4[%c0_5, %c0_6], %5 {strides = array<i32>} : memref<8x256xf32, #tpu.memory_space<vmem>>, vector<8x256xf32>,
    %7 = vector.extract_strided_slice %5 {offsets = [0, 0], sizes = [8, 128], strides = [1, 1]} : vector<8x256xf32> to vector<8x128xf32>
    %8 = vector.extract_strided_slice %5 {offsets = [0, 128], sizes = [8, 128], strides = [1, 1]} : vector<8x256xf32> to vector<8x128xf32>
    %cst_7 = arith.constant dense<0xFF800000> : vector<8xf32>
    %9 = vector.multi_reduction <maximumf>, %7, %cst_7 [1] : vector<8x128xf32> to vector<8xf32>
    %10 = vector.shape_cast %9 : vector<8xf32> to vector<8x1xf32>
    %cst_8 = arith.constant dense<0xFF800000> : vector<8xf32>
    %11 = vector.multi_reduction <maximumf>, %8, %cst_8 [1] : vector<8x128xf32> to vector<8xf32>
    %12 = vector.shape_cast %11 : vector<8xf32> to vector<8x1xf32>
    %13 = vector.broadcast %10 : vector<8x1xf32> to vector<8x128xf32>
    %14 = arith.subf %7, %13 : vector<8x128xf32>
    %15 = math.exp %14 : vector<8x128xf32>
    %cst_9 = arith.constant dense<0.000000e+00> : vector<8xf32>
    %16 = vector.multi_reduction <add>, %15, %cst_9 [1] : vector<8x128xf32> to vector<8xf32>
    %17 = vector.shape_cast %16 : vector<8xf32> to vector<8x1xf32>
    %18 = math.log %17 : vector<8x1xf32>
    %19 = arith.addf %10, %18 : vector<8x1xf32>
    %20 = vector.broadcast %12 : vector<8x1xf32> to vector<8x128xf32>
    %21 = arith.subf %8, %20 : vector<8x128xf32>
    %22 = math.exp %21 : vector<8x128xf32>
    %cst_10 = arith.constant dense<0.000000e+00> : vector<8xf32>
    %23 = vector.multi_reduction <add>, %22, %cst_10 [1] : vector<8x128xf32> to vector<8xf32>
    %24 = vector.shape_cast %23 : vector<8xf32> to vector<8x1xf32>
    %25 = math.log %24 : vector<8x1xf32>
    %26 = arith.addf %12, %25 : vector<8x1xf32>
    %27 = vector.broadcast %19 : vector<8x1xf32> to vector<8x128xf32>
    %28 = arith.subf %7, %27 : vector<8x128xf32>
    %29 = vector.broadcast %26 : vector<8x1xf32> to vector<8x128xf32>
    %30 = arith.subf %8, %29 : vector<8x128xf32>
    %31 = math.exp %28 : vector<8x128xf32>
    %32 = arith.subf %28, %30 : vector<8x128xf32>
    %33 = arith.mulf %31, %32 : vector<8x128xf32>
    %cst_11 = arith.constant dense<0.000000e+00> : vector<8xf32>
    %34 = vector.multi_reduction <add>, %33, %cst_11 [1] : vector<8x128xf32> to vector<8xf32>
    %35 = vector.shape_cast %34 : vector<8xf32> to vector<8x1xf32>
    %c0_12 = arith.constant 0 : index
    %c0_13 = arith.constant 0 : index
    %36 = vector.load %arg5[%c0_12, %c0_13] : memref<8x1xf32, #tpu.memory_space<vmem>>, vector<8x1xf32>
    tpu.vector_store %arg5[%c0_12, %c0_13], %35 {strides = array<i32>} : memref<8x1xf32, #tpu.memory_space<vmem>>, vector<8x1xf32>,
    return
  }
  func.func @transform_0(%arg0: i32) -> (i32, i32) {
    %c0_i32 = arith.constant 0 : i32
    %c0_i32_0 = arith.constant 0 : i32
    return %arg0, %c0_i32 : i32, i32
  }
  func.func @transform_1(%arg0: i32) -> (i32, i32) {
    %c0_i32 = arith.constant 0 : i32
    %c0_i32_0 = arith.constant 0 : i32
    %c0_i32_1 = arith.constant 0 : i32
    return %c0_i32, %c0_i32_0 : i32, i32
  }
  func.func @transform_2(%arg0: i32) -> (i32, i32) {
    %c0_i32 = arith.constant 0 : i32
    %c0_i32_0 = arith.constant 0 : i32
    %c0_i32_1 = arith.constant 0 : i32
    return %c0_i32, %c0_i32_0 : i32, i32
  }
  func.func @transform_3(%arg0: i32) -> (i32, i32) {
    %c0_i32 = arith.constant 0 : i32
    %c0_i32_0 = arith.constant 0 : i32
    return %arg0, %c0_i32 : i32, i32
  }
  func.func @transform_4(%arg0: i32) -> (i32, i32) {
    %c0_i32 = arith.constant 0 : i32
    %c0_i32_0 = arith.constant 0 : i32
    return %arg0, %c0_i32 : i32, i32
  }
}

</mosaic_0001>

<llo_original>
// kernel: tpu_custom_call.1
$region0: #{tpu_custom_call.1}
  #allocation0 [shape = 'u32[]', space=smem, size = 0x4, offset = 0x4, fixed_abs, tag = 'smem constant byte address 0x4 - core index']
  #allocation1 [shape = 'u32[144,128]{1,0:T(1,128)}', space=vmem, size = 0x12000, scoped, tag = 'internal scratch']
  %s0 = inlined_call_operand.hbm [shape: bf16[8,32], index: 0, kind: input, shape index: {}]
  %s1 = inlined_call_operand.hbm [shape: bf16[32,256], index: 1, kind: input, shape index: {}]
  %s2 = inlined_call_operand.hbm [shape: f32[1,256], index: 2, kind: input, shape index: {}]
  %s3 = inlined_call_operand.hbm [shape: f32[8,256], index: 3, kind: output, shape index: {0}]
  %s4 = inlined_call_operand.hbm [shape: f32[8,1], index: 4, kind: output, shape index: {1}]
  %5 = xla_tuple %s3, %s4
  %s6 = sld [smem:[#allocation0]]
  $region42: #{tpu_custom_call.1} parent=0
    _
  %s8 = ssub.s32 1, %s6
  %s9 = scalar_select 0, %s8, %s6
  $region1: #{tpu_custom_call.1} parent=0
    #allocation2 [shape = 'u8[2048]{0}', space=vmem, size = 0x800, scoped, tag = 'input window, operand 0, single buffered']
    #allocation3 [shape = 's32[1]{0}', space=sflag, size = 0x4, scoped, tag = 'scoped memory for tpu_custom_call.1']
    #allocation4 [shape = 's32[1]{0}', space=sflag, size = 0x4, scoped, tag = 'scoped memory for tpu_custom_call.1']
    #allocation5 [shape = 'u8[16384]{0}', space=vmem, size = 0x4000, scoped, tag = 'input window, operand 1, single buffered']
    #allocation6 [shape = 's32[1]{0}', space=sflag, size = 0x4, scoped, tag = 'scoped memory for tpu_custom_call.1']
    #allocation7 [shape = 'u8[1024]{0}', space=vmem, size = 0x400, scoped, tag = 'input window, operand 2, single buffered']
    #allocation8 [shape = 'u8[8192]{0}', space=vmem, size = 0x2000, scoped, tag = 'output window, operand 0, single buffered']
    #allocation9 [shape = 'u8[4096]{0}', space=vmem, size = 0x1000, scoped, tag = 'output window, operand 1, single buffered']
    #allocation10 [shape = 's32[1]{0}', space=sflag, size = 0x4, scoped, tag = 'scoped memory for tpu_custom_call.1']
    %10 = vsyncpa [#allocation3], 0
    %11 = vsyncpa [#allocation6], 0
    %12 = vsyncpa [#allocation4], 0
    %13 = vsyncpa [#allocation10], 0
    // Predicated region
    $region2: #{tpu_custom_call.1} parent=1 // pred_check
      _
    $region3: #{tpu_custom_call.1} parent=1 // pred_check_branch
      %15 = sbr.rel (0) target = $region5
    $region4: #{tpu_custom_call.1} parent=1 // pred_region
      %s17 = ssub.s32 64, 64
      %18 = vsyncadd [#allocation3], %s17
      %s20 = sshll.u32 [#allocation2], 4
      %s21 = int_to_ptr.vmem [resolvable:$true] %s20
      %23 = dma.hbm_to_vmem [thread:$0]  %s0, 64, %s21, [#allocation3]
    $region5: #{tpu_custom_call.1} parent=1 // pred_fallthru
      _
    // Predicated region
    $region6: #{tpu_custom_call.1} parent=1 // pred_check
      _
    $region7: #{tpu_custom_call.1} parent=1 // pred_check_branch
      %25 = sbr.rel (0) target = $region9
    $region8: #{tpu_custom_call.1} parent=1 // pred_region
      %s27 = ssub.s32 512, 512
      %28 = vsyncadd [#allocation6], %s27
      %s29 = sshll.u32 [#allocation5], 4
      %s30 = int_to_ptr.vmem [resolvable:$true] %s29
      %35 = dma.hbm_to_vmem [thread:$0]  %s1, 512, %s30, [#allocation6], 128, 128, 8
    $region9: #{tpu_custom_call.1} parent=1 // pred_fallthru
      _
    // Predicated region
    $region10: #{tpu_custom_call.1} parent=1 // pred_check
      _
    $region11: #{tpu_custom_call.1} parent=1 // pred_check_branch
      %37 = sbr.rel (0) target = $region13
    $region12: #{tpu_custom_call.1} parent=1 // pred_region
      %s39 = ssub.s32 32, 32
      %40 = vsyncadd [#allocation6], %s39
      %s42 = sshll.u32 [#allocation7], 4
      %s43 = int_to_ptr.vmem [resolvable:$true] %s42
      %45 = dma.hbm_to_vmem [thread:$0]  %s2, 32, %s43, [#allocation6]
    $region13: #{tpu_custom_call.1} parent=1 // pred_fallthru
      _
    // Predicated region
    $region14: #{tpu_custom_call.1} parent=1 // pred_check
      _
    $region15: #{tpu_custom_call.1} parent=1 // pred_check_branch
      %47 = sbr.rel (0) target = $region17
    $region16: #{tpu_custom_call.1} parent=1 // pred_region
      %48 = dma.done [#allocation3], 64
    $region17: #{tpu_custom_call.1} parent=1 // pred_fallthru
      _
    // Predicated region
    $region18: #{tpu_custom_call.1} parent=1 // pred_check
      _
    $region19: #{tpu_custom_call.1} parent=1 // pred_check_branch
      %50 = sbr.rel (0) target = $region21
    $region20: #{tpu_custom_call.1} parent=1 // pred_region
      %51 = dma.done [#allocation6], 512
    $region21: #{tpu_custom_call.1} parent=1 // pred_fallthru
      _
    // Predicated region
    $region22: #{tpu_custom_call.1} parent=1 // pred_check
      _
    $region23: #{tpu_custom_call.1} parent=1 // pred_check_branch
      %53 = sbr.rel (0) target = $region25
    $region24: #{tpu_custom_call.1} parent=1 // pred_region
      %54 = dma.done [#allocation6], 32
    $region25: #{tpu_custom_call.1} parent=1 // pred_fallthru
      _
    %v56 = vld [vmem:[#allocation2] sm:$0xf]
    %v57 = vld [vmem:[#allocation5] sm:$0xff]
    %v58 = vld [vmem:[#allocation5 + $0x8] sm:$0xff]
    %v59 = vld [vmem:[#allocation5 + $0x10] sm:$0xff]
    %v60 = vld [vmem:[#allocation5 + $0x18] sm:$0xff]
    %v61 = vld [vmem:[#allocation7] sm:$0x3]
    %v63 = vlaneseq
    %v64 = vshrl.u32 %v63, 7
    %v65 = vsub.s32 0, %v64
    %v66 = vrot.slane %v61, %v65
    %v67 = vlaneseq
    %v68 = vshrl.u32 %v67, 7
    %v69 = vsub.s32 1, %v68
    %v70 = vrot.slane %v61, %v69
    %v77 = vunpack.c.l.b16 %v57
    %v78 = vunpack.c.h.b16 %v57
    %v79 = vunpack.c.l.b16 %v58
    %v80 = vunpack.c.h.b16 %v58
    %v81 = vunpack.c.l.b16 %v59
    %v82 = vunpack.c.h.b16 %v59
    %v83 = vunpack.c.l.b16 %v60
    %v84 = vunpack.c.h.b16 %v60
    %v85 = vpack.c.b16 %v79, %v77
    %v86 = vpack.c.b16 %v80, %v78
    %v87 = vpack.c.b16 %v83, %v81
    %v88 = vpack.c.b16 %v84, %v82
    %vm93 = vcmask 261120
    %v95 = vsel %vm93, %v56, 0
    %97 = vmatprep.subr.bf16.mxu0 %v86
    %98 = vmatpush1.bf16.msra.mxu0 %v85
    %99 = vmatprep.subr.bf16.mxu0 %v88
    %100 = vmatpush1.bf16.msra.mxu0 %v87
    %101 = vmatprep.subr.bf16.mxu0 0
    %102 = vmatpush1.bf16.msra.mxu0 0
    %103 = vmatprep.subr.bf16.mxu0 0
    %104 = vmatpush1.bf16.msra.mxu0 0
    %105 = vmatprep.subr.bf16.mxu0 0
    %106 = vmatpush1.bf16.msra.mxu0 0
    %107 = vmatprep.subr.bf16.mxu0 0
    %108 = vmatpush1.bf16.msra.mxu0 0
    %109 = vmatprep.subr.bf16.mxu0 0
    %110 = vmatpush1.bf16.msra.mxu0 0
    %111 = vmatprep.subr.bf16.mxu0 0
    %112 = vmatpush1.bf16.msra.mxu0 0
    %113 = vmatprep.subr.bf16.mxu0 0
    %114 = vmatpush1.bf16.msra.mxu0 0
    %115 = vmatprep.subr.bf16.mxu0 0
    %116 = vmatpush1.bf16.msra.mxu0 0
    %117 = vmatprep.subr.bf16.mxu0 0
    %118 = vmatpush1.bf16.msra.mxu0 0
    %119 = vmatprep.subr.bf16.mxu0 0
    %120 = vmatpush1.bf16.msra.mxu0 0
    %121 = vmatprep.subr.bf16.mxu0 0
    %122 = vmatpush1.bf16.msra.mxu0 0
    %123 = vmatprep.subr.bf16.mxu0 0
    %124 = vmatpush1.bf16.msra.mxu0 0
    %125 = vmatprep.subr.bf16.mxu0 0
    %126 = vmatpush1.bf16.msra.mxu0 0
    %127 = vmatprep.subr.bf16.mxu0 0
    %128 = vmatpush1.bf16.msra.mxu0 0
    %129 = vmatprep.mubr.bf16.mxu0 0
    %130 = vmatmul.mubr.bf16.gmra.mrb[0].mxu0 %v95
    %v131 = vpop.f32.mrb[0].mxu0
    %v132 = vadd.f32 %v66, %v131
    %v133 = vpop.f32.mrb[0].mxu0
    %v134 = vadd.f32 %v70, %v133
    %v135 = vpop.f32.mrb[0].mxu0
    %v136 = vpop.f32.mrb[0].mxu0
    %137 = vdwg.mxu0
    %138 = vst [vmem:[#allocation8] sm:$0xff] %v132
    %139 = vst [vmem:[#allocation8 + $0x8] sm:$0xff] %v134
    %140 = vmax.xlane.f32.xlu0 %v132
    %v141 = vpop.xlane.xlu0 %140
    %142 = vmax.xlane.f32.xlu0 %v134
    %v143 = vpop.xlane.xlu0 %142
    %v144 = vsub.f32 %v132, %v141
    %v145 = vmul.f32 %v144, 1.442695
    %v146 = vpow.pop %v145
    %147 = vadd.xlane.f32.xlu0 %v146
    %v148 = vpop.xlane.xlu0 %147
    %v149 = vlog2.pop %v148
    %v150 = vmul.f32 %v149, 0.6931472
    %v151 = vadd.f32 %v141, %v150
    %v152 = vsub.f32 %v134, %v143
    %v153 = vmul.f32 %v152, 1.442695
    %v154 = vpow.pop %v153
    %155 = vadd.xlane.f32.xlu0 %v154
    %v156 = vpop.xlane.xlu0 %155
    %v157 = vlog2.pop %v156
    %v158 = vmul.f32 %v157, 0.6931472
    %v159 = vadd.f32 %v143, %v158
    %v160 = vsub.f32 %v132, %v151
    %v161 = vsub.f32 %v134, %v159
    %v162 = vmul.f32 %v160, 1.442695
    %v163 = vpow.pop %v162
    %v164 = vsub.f32 %v160, %v161
    %v165 = vmul.f32 %v163, %v164
    %166 = vadd.xlane.f32.xlu0 %v165
    %v167 = vpop.xlane.xlu0 %166
    %vm168 = vcmask 7168
    %169 = vst.msk [vmem:[#allocation9] sm:$0xff] %vm168, %v167
    // Predicated region
    $region26: #{tpu_custom_call.1} parent=1 // pred_check
      _
    $region27: #{tpu_custom_call.1} parent=1 // pred_check_branch
      %171 = sbr.rel (0) target = $region29
    $region28: #{tpu_custom_call.1} parent=1 // pred_region
      %s173 = ssub.s32 256, 256
      %174 = vsyncadd [#allocation4], %s173
      %s176 = sshll.u32 [#allocation8], 4
      %s177 = int_to_ptr.vmem [resolvable:$true] %s176
      %179 = dma.vmem_to_hbm [thread:$0]  %s177, 256, %s3, [#allocation4]
    $region29: #{tpu_custom_call.1} parent=1 // pred_fallthru
      _
    // Predicated region
    $region30: #{tpu_custom_call.1} parent=1 // pred_check
      _
    $region31: #{tpu_custom_call.1} parent=1 // pred_check_branch
      %181 = sbr.rel (0) target = $region33
    $region32: #{tpu_custom_call.1} parent=1 // pred_region
      %s183 = ssub.s32 128, 128
      %184 = vsyncadd [#allocation10], %s183
      %s186 = sshll.u32 [#allocation9], 4
      %s187 = int_to_ptr.vmem [resolvable:$true] %s186
      %189 = dma.vmem_to_hbm [thread:$0]  %s187, 128, %s4, [#allocation10]
    $region33: #{tpu_custom_call.1} parent=1 // pred_fallthru
      _
    // Predicated region
    $region34: #{tpu_custom_call.1} parent=1 // pred_check
      _
    $region35: #{tpu_custom_call.1} parent=1 // pred_check_branch
      %191 = sbr.rel (0) target = $region37
    $region36: #{tpu_custom_call.1} parent=1 // pred_region
      %192 = dma.done [#allocation4], 256
    $region37: #{tpu_custom_call.1} parent=1 // pred_fallthru
      _
    // Predicated region
    $region38: #{tpu_custom_call.1} parent=1 // pred_check
      _
    $region39: #{tpu_custom_call.1} parent=1 // pred_check_branch
      %194 = sbr.rel (0) target = $region41
    $region40: #{tpu_custom_call.1} parent=1 // pred_region
      %195 = dma.done [#allocation10], 128
    $region41: #{tpu_custom_call.1} parent=1 // pred_fallthru
      _
    %196 = vsyncpa [#allocation3], 1
    %197 = vsyncpa [#allocation6], 1
    %198 = vsyncpa [#allocation4], 1
    %199 = vsyncpa [#allocation10], 1

</llo_original>
